<compile_context>
chip_gen: v6e
topology: v6e:2x2x1
jax: 0.10.0
libtpu: 0.0.40
codegen_flags: <defaults>
</compile_context>

<pallas_src>
import jax
import jax.numpy as jnp
from jax import lax
from jax.experimental import pallas as pl
from jax.experimental.pallas import tpu as pltpu

BACKS = 15
INPUT_DIM = 4 * BACKS + 2   # 62
HIDDEN = 12
OUTPUT_DIM = 4              # output_dim of fc1_1 (free parameter of the module)

# Parameter-slab layout (rows x 128 lanes, f32):
R_W1 = 0                     # rows [0, 12):  W1  [HIDDEN, INPUT_DIM] at cols [0, 62)
R_W11 = HIDDEN               # rows [12, 16): W11 [OUTPUT_DIM, HIDDEN] at cols [0, 12)
R_W2 = HIDDEN + OUTPUT_DIM   # rows [16, 20): W2^T [OUTPUT_DIM, 1]     at col 0
R_B2 = R_W2 + OUTPUT_DIM     # row 20:        b2 scalar                at col 0
BIAS_COL = 64                # b1 at rows [0,12) col 64; b11 at rows [12,16) col 64
SLAB_ROWS = 24               # padded row count (multiple of 8)

# Contract the last dim of both operands ("q @ k^T" flash-attention pattern).
_TRANS_B_DNUMS = (((1,), (1,)), ((), ()))


def critic_kernel(x_ref, p_ref, o_ref):
    # Parameters come from the resident slab (constant index_map -> the HBM
    # DMA happens once; these are cheap VMEM reads each tile).
    w1 = p_ref[R_W1:R_W1 + HIDDEN, 0:INPUT_DIM]                     # (12, 62)
    b1 = p_ref[R_W1:R_W1 + HIDDEN, BIAS_COL:BIAS_COL + 1]           # (12, 1)
    w11 = p_ref[R_W11:R_W11 + OUTPUT_DIM, 0:HIDDEN]                 # (4, 12)
    b11 = p_ref[R_W11:R_W11 + OUTPUT_DIM, BIAS_COL:BIAS_COL + 1]    # (4, 1)
    w2c = p_ref[R_W2:R_W2 + OUTPUT_DIM, 0:1]                        # (4, 1) == W2^T
    b2 = p_ref[R_B2:R_B2 + 1, 0:1]                                  # (1, 1)

    x = x_ref[...]                                                  # (TB, 62) f32

    # fc1 + ReLU: (12, 62) . (TB, 62)^T -> (12, TB).  The transposed-RHS
    # matmul does the batch-major -> feature-major flip on the MXU, keeping
    # everything downstream batch-on-lanes (lane-dense stores).
    h1 = lax.dot_general(w1, x, _TRANS_B_DNUMS,
                         preferred_element_type=jnp.float32) + b1   # (12, TB)
    h1 = jnp.maximum(h1, 0.0)

    # fc1_1 + ReLU: (4, 12) . (12, TB) -> (4, TB)   (MXU)
    h2 = jnp.dot(w11, h1, preferred_element_type=jnp.float32) + b11  # (4, TB)
    h2 = jnp.maximum(h2, 0.0)

    # fc2 (4 -> 1): tiny contraction on the VPU/XLU instead of a >97%-padded
    # MXU pass per tile.
    h3 = jnp.sum(h2 * w2c, axis=0, keepdims=True) + b2               # (1, TB)

    # Softmax over the model's last dim (size 1 == axis 0 here): numerator and
    # denominator are identical, so this is exactly 1.0 for finite h3 —
    # bit-identical to PyTorch's max-subtracted softmax on a [B, 1] head.
    # TODO(synk): confirm whether softmax on a [B, 1] value head is intended;
    # if not, store h3 here directly.
    o_ref[...] = jnp.exp(h3 - h3)                                    # (1, TB)


def critic_forward(x, slab, *, tile_batch=8192):
    """x: [B, INPUT_DIM] float32; slab: packed (SLAB_ROWS, 128) f32 params."""
    B = x.shape[0]
    assert x.shape[1] == INPUT_DIM
    x = x.astype(jnp.float32)

    # Batch tile: multiple of 128 (lanes).  Keep it large to amortize the
    # ~0.35 us per-grid-step cost, but cap it near B/2 so there are >=2 batch
    # tiles whenever possible (lets "parallel" shard across both v7x TCs).
    TB = tile_batch
    if B <= TB:
        half = pl.cdiv(B, 2)
        TB = max(128, pl.cdiv(half, 128) * 128)
    n_tiles = pl.cdiv(B, TB)
    B_pad = n_tiles * TB

    # Tail-only padding; no transpose, no full-array zero materialization.
    x_in = x if B_pad == B else jnp.pad(x, ((0, B_pad - B), (0, 0)))

    cost = pl.CostEstimate(
        flops=2 * B * (INPUT_DIM * HIDDEN + HIDDEN * OUTPUT_DIM + OUTPUT_DIM),
        transcendentals=B,
        bytes_accessed=(INPUT_DIM * B_pad + B_pad) * 4 + SLAB_ROWS * 128 * 4,
    )

    out_t = pl.pallas_call(
        critic_kernel,
        out_shape=jax.ShapeDtypeStruct((1, B_pad), jnp.float32),
        grid=(n_tiles,),
        in_specs=[
            # x tile: (TB, 62) contiguous rows, pipelined along the batch grid.
            pl.BlockSpec((TB, INPUT_DIM), lambda i: (i, 0)),
            # Parameter slab: constant index_map -> resident in VMEM, one DMA.
            pl.BlockSpec((SLAB_ROWS, 128), lambda i: (0, 0)),
        ],
        out_specs=pl.BlockSpec((1, TB), lambda i: (0, i)),
        compiler_params=pltpu.CompilerParams(
            dimension_semantics=("parallel",)),
        cost_estimate=cost,
    )(x_in, slab)

    # (1, B_pad) -> (B, 1): slice the valid batch; reshape is layout-free.
    return out_t[0, :B].reshape(B, 1)


def init_params(key):
    """PyTorch-style init: U(-1/sqrt(fan_in), 1/sqrt(fan_in)); weights [out, in]."""
    ks = jax.random.split(key, 6)

    def lin(kw, kb, fan_in, fan_out):
        bound = 1.0 / jnp.sqrt(float(fan_in))
        w = jax.random.uniform(kw, (fan_out, fan_in), jnp.float32, -bound, bound)
        b = jax.random.uniform(kb, (fan_out,), jnp.float32, -bound, bound)
        return w, b

    w1, b1 = lin(ks[0], ks[1], INPUT_DIM, HIDDEN)
    w11, b11 = lin(ks[2], ks[3], HIDDEN, OUTPUT_DIM)
    w2, b2 = lin(ks[4], ks[5], OUTPUT_DIM, 1)
    return {"w1": w1, "b1": b1, "w1_1": w11, "b1_1": b11, "w2": w2, "b2": b2}


def pack_params(p):
    """Pack all six parameter tensors into one (SLAB_ROWS, 128) f32 slab."""
    slab = jnp.zeros((SLAB_ROWS, 128), jnp.float32)
    slab = slab.at[R_W1:R_W1 + HIDDEN, 0:INPUT_DIM].set(p["w1"])
    slab = slab.at[R_W1:R_W1 + HIDDEN, BIAS_COL].set(p["b1"])
    slab = slab.at[R_W11:R_W11 + OUTPUT_DIM, 0:HIDDEN].set(p["w1_1"])
    slab = slab.at[R_W11:R_W11 + OUTPUT_DIM, BIAS_COL].set(p["b1_1"])
    slab = slab.at[R_W2:R_W2 + OUTPUT_DIM, 0].set(p["w2"][0, :])  # W2^T column
    slab = slab.at[R_B2, 0].set(p["b2"][0])
    return slab


def critic_reference(x, p):
    h1 = jnp.maximum(x @ p["w1"].T + p["b1"], 0.0)
    h2 = jnp.maximum(h1 @ p["w1_1"].T + p["b1_1"], 0.0)
    h3 = h2 @ p["w2"].T + p["b2"]
    return jax.nn.softmax(h3, axis=-1)


if __name__ == "__main__":
    key = jax.random.PRNGKey(0)
    kx, kp = jax.random.split(key)

    B = 2
    x = jax.random.normal(kx, (B, INPUT_DIM), jnp.float32)
    params = init_params(kp)
    slab = pack_params(params)

    out = critic_forward(x, slab)
    out = jax.block_until_ready(out)

    ref = critic_reference(x, params)
    assert out.shape == (B, 1), out.shape
    assert jnp.allclose(out, ref, atol=1e-5, rtol=1e-5), (out, ref)

    print("KERNEL_OK")
</pallas_src>

<mosaic_0001>
module attributes {stable_mosaic.version = 11 : i64} {
  func.func @critic_kernel(%arg0: i32, %arg1: memref<128x62xf32, #tpu.memory_space<vmem>>, %arg2: memref<24x128xf32, #tpu.memory_space<vmem>>, %arg3: memref<1x128xf32, #tpu.memory_space<vmem>>) attributes {dimension_semantics = [#tpu.dimension_semantics<parallel>], iteration_bounds = array<i64: 1>, scalar_prefetch = 0 : i64, scratch_operands = 0 : i64, tpu.core_type = #tpu.core_type<tc>, window_params = [{transform_indices = @transform_0, window_bounds = array<i64: 128, 62>}, {pipeline_mode = #tpu.pipeline_mode<synchronous>, transform_indices = @transform_1, window_bounds = array<i64: 24, 128>}, {transform_indices = @transform_2, window_bounds = array<i64: 1, 128>}]} {
    %c0 = arith.constant 0 : index
    %c0_0 = arith.constant 0 : index
    %0 = vector.load %arg2[%c0, %c0_0] : memref<24x128xf32, #tpu.memory_space<vmem>>, vector<12x62xf32>
    %c0_1 = arith.constant 0 : index
    %c64 = arith.constant 64 : index
    %1 = vector.load %arg2[%c0_1, %c64] : memref<24x128xf32, #tpu.memory_space<vmem>>, vector<12x1xf32>
    %c12 = arith.constant 12 : index
    %c0_2 = arith.constant 0 : index
    %2 = vector.load %arg2[%c12, %c0_2] : memref<24x128xf32, #tpu.memory_space<vmem>>, vector<4x12xf32>
    %c12_3 = arith.constant 12 : index
    %c64_4 = arith.constant 64 : index
    %3 = vector.load %arg2[%c12_3, %c64_4] : memref<24x128xf32, #tpu.memory_space<vmem>>, vector<4x1xf32>
    %c16 = arith.constant 16 : index
    %c0_5 = arith.constant 0 : index
    %4 = vector.load %arg2[%c16, %c0_5] : memref<24x128xf32, #tpu.memory_space<vmem>>, vector<4x1xf32>
    %c20 = arith.constant 20 : index
    %c0_6 = arith.constant 0 : index
    %5 = vector.load %arg2[%c20, %c0_6] : memref<24x128xf32, #tpu.memory_space<vmem>>, vector<1x1xf32>
    %c0_7 = arith.constant 0 : index
    %c0_8 = arith.constant 0 : index
    %6 = vector.load %arg1[%c0_7, %c0_8] : memref<128x62xf32, #tpu.memory_space<vmem>>, vector<128x62xf32>
    %cst = arith.constant dense<0.000000e+00> : vector<12x128xf32>
    %7 = tpu.matmul %0, %6, %cst {dimension_numbers = #tpu.dot_dimension_numbers<[1], [1], [0], [0], [0, 0, 1, 0], [], []>} : vector<12x62xf32>, vector<128x62xf32>, vector<12x128xf32> -> vector<12x128xf32>
    %8 = vector.broadcast %1 : vector<12x1xf32> to vector<12x128xf32>
    %9 = arith.addf %7, %8 : vector<12x128xf32>
    %cst_9 = arith.constant 0.000000e+00 : f32
    %10 = vector.broadcast %cst_9 : f32 to vector<12x128xf32>
    %11 = arith.maximumf %9, %10 : vector<12x128xf32>
    %cst_10 = arith.constant dense<0.000000e+00> : vector<4x128xf32>
    %12 = tpu.matmul %2, %11, %cst_10 {dimension_numbers = #tpu.dot_dimension_numbers<[1], [0], [0], [1], [0, 0, 1, 1], [], []>} : vector<4x12xf32>, vector<12x128xf32>, vector<4x128xf32> -> vector<4x128xf32>
    %13 = vector.broadcast %3 : vector<4x1xf32> to vector<4x128xf32>
    %14 = arith.addf %12, %13 : vector<4x128xf32>
    %cst_11 = arith.constant 0.000000e+00 : f32
    %15 = vector.broadcast %cst_11 : f32 to vector<4x128xf32>
    %16 = arith.maximumf %14, %15 : vector<4x128xf32>
    %17 = vector.broadcast %4 : vector<4x1xf32> to vector<4x128xf32>
    %18 = arith.mulf %16, %17 : vector<4x128xf32>
    %cst_12 = arith.constant dense<0.000000e+00> : vector<128xf32>
    %19 = vector.multi_reduction <add>, %18, %cst_12 [0] : vector<4x128xf32> to vector<128xf32>
    %20 = vector.shape_cast %19 : vector<128xf32> to vector<1x128xf32>
    %21 = vector.broadcast %5 : vector<1x1xf32> to vector<1x128xf32>
    %22 = arith.addf %20, %21 : vector<1x128xf32>
    %23 = arith.subf %22, %22 : vector<1x128xf32>
    %24 = math.exp %23 : vector<1x128xf32>
    %c0_13 = arith.constant 0 : index
    %c0_14 = arith.constant 0 : index
    %25 = vector.load %arg3[%c0_13, %c0_14] : memref<1x128xf32, #tpu.memory_space<vmem>>, vector<1x128xf32>
    tpu.vector_store %arg3[%c0_13, %c0_14], %24 {strides = array<i32>} : memref<1x128xf32, #tpu.memory_space<vmem>>, vector<1x128xf32>,
    return
  }
  func.func @transform_0(%arg0: i32) -> (i32, i32) {
    %c0_i32 = arith.constant 0 : i32
    %c0_i32_0 = arith.constant 0 : i32
    return %arg0, %c0_i32 : i32, i32
  }
  func.func @transform_1(%arg0: i32) -> (i32, i32) {
    %c0_i32 = arith.constant 0 : i32
    %c0_i32_0 = arith.constant 0 : i32
    %c0_i32_1 = arith.constant 0 : i32
    return %c0_i32, %c0_i32_0 : i32, i32
  }
  func.func @transform_2(%arg0: i32) -> (i32, i32) {
    %c0_i32 = arith.constant 0 : i32
    %c0_i32_0 = arith.constant 0 : i32
    return %c0_i32, %arg0 : i32, i32
  }
}

</mosaic_0001>

<llo_original>
// kernel: tpu_custom_call.1
$region0: #{tpu_custom_call.1}
  #allocation0 [shape = 'u32[]', space=smem, size = 0x4, offset = 0x4, fixed_abs, tag = 'smem constant byte address 0x4 - core index']
  #allocation1 [shape = 'u32[144,128]{1,0:T(1,128)}', space=vmem, size = 0x12000, scoped, tag = 'internal scratch']
  %s0 = inlined_call_operand.vmem [shape: f32[128,62], index: 0, kind: input, shape index: {}]
  %s1 = inlined_call_operand.vmem [shape: f32[24,128], index: 1, kind: input, shape index: {}]
  %s2 = inlined_call_operand.hbm [shape: f32[1,128], index: 2, kind: output, shape index: {}]
  %s3 = sld [smem:[#allocation0]]
  $region18: #{tpu_custom_call.1} parent=0
    _
  %s5 = ssub.s32 1, %s3
  %s6 = scalar_select 0, %s5, %s3
  $region1: #{tpu_custom_call.1} parent=0
    #allocation2 [shape = 'u8[512]{0}', space=vmem, size = 0x400, scoped, tag = 'output window, operand 0, single buffered']
    #allocation3 [shape = 's32[1]{0}', space=sflag, size = 0x4, scoped, tag = 'scoped memory for tpu_custom_call.1']
    %7 = vsyncpa [#allocation3], 0
    // Predicated region
    $region2: #{tpu_custom_call.1} parent=1 // pred_check
      _
    $region3: #{tpu_custom_call.1} parent=1 // pred_check_branch
      %9 = sbr.rel (0) target = $region5
    $region4: #{tpu_custom_call.1} parent=1 // pred_region
      _
    $region5: #{tpu_custom_call.1} parent=1 // pred_fallthru
      _
    // Predicated region
    $region6: #{tpu_custom_call.1} parent=1 // pred_check
      _
    $region7: #{tpu_custom_call.1} parent=1 // pred_check_branch
      %11 = sbr.rel (0) target = $region9
    $region8: #{tpu_custom_call.1} parent=1 // pred_region
      _
    $region9: #{tpu_custom_call.1} parent=1 // pred_fallthru
      _
    %v12 = vld [vmem:[%s1] sm:$0xff]
    %v13 = vld [vmem:[%s1 + $0x8] sm:$0xf]
    %v14 = vld [vmem:[%s1 + $0xc] sm:$0xf]
    %v15 = vld [vmem:[%s1 + $0x10] sm:$0xf]
    %v16 = vld [vmem:[%s1 + $0x14] sm:$0x1]
    %v17 = vld [vmem:[%s0] sm:$0xff]
    %v18 = vld [vmem:[%s0 + $0x8] sm:$0xff]
    %v19 = vld [vmem:[%s0 + $0x10] sm:$0xff]
    %v20 = vld [vmem:[%s0 + $0x18] sm:$0xff]
    %v21 = vld [vmem:[%s0 + $0x20] sm:$0xff]
    %v22 = vld [vmem:[%s0 + $0x28] sm:$0xff]
    %v23 = vld [vmem:[%s0 + $0x30] sm:$0xff]
    %v24 = vld [vmem:[%s0 + $0x38] sm:$0xff]
    %v25 = vld [vmem:[%s0 + $0x40] sm:$0xff]
    %v26 = vld [vmem:[%s0 + $0x48] sm:$0xff]
    %v27 = vld [vmem:[%s0 + $0x50] sm:$0xff]
    %v28 = vld [vmem:[%s0 + $0x58] sm:$0xff]
    %v29 = vld [vmem:[%s0 + $0x60] sm:$0xff]
    %v30 = vld [vmem:[%s0 + $0x68] sm:$0xff]
    %v31 = vld [vmem:[%s0 + $0x70] sm:$0xff]
    %v32 = vld [vmem:[%s0 + $0x78] sm:$0xff]
    %34 = vset.pattern.permute.xlu0 64
    %35 = vperm.xlu0 %34, %v12
    %v36 = vpop.permute.xlu0 %35
    %39 = vset.pattern.permute.xlu0 64
    %40 = vperm.xlu0 %39, %v13
    %v41 = vpop.permute.xlu0 %40
    %vm43 = vcmask 506880
    %v44 = vsel %vm43, %v12, 0
    %v46 = vsel %vm43, %v13, 0
    %v49 = vsel %vm43, %v17, 0
    %v52 = vsel %vm43, %v18, 0
    %v55 = vsel %vm43, %v19, 0
    %v58 = vsel %vm43, %v20, 0
    %v61 = vsel %vm43, %v21, 0
    %v64 = vsel %vm43, %v22, 0
    %v67 = vsel %vm43, %v23, 0
    %v70 = vsel %vm43, %v24, 0
    %v73 = vsel %vm43, %v25, 0
    %v76 = vsel %vm43, %v26, 0
    %v79 = vsel %vm43, %v27, 0
    %v82 = vsel %vm43, %v28, 0
    %v85 = vsel %vm43, %v29, 0
    %v88 = vsel %vm43, %v30, 0
    %v91 = vsel %vm43, %v31, 0
    %v94 = vsel %vm43, %v32, 0
    %96 = vmatprep.subr.mxu0 0.0
    %97 = vmatpush1.xpose.msra.mxu0 %v94
    %98 = vmatprep.subr.mxu0 0.0
    %99 = vmatpush1.xpose.msra.mxu0 %v91
    %100 = vmatprep.subr.mxu0 0.0
    %101 = vmatpush1.xpose.msra.mxu0 %v88
    %102 = vmatprep.subr.mxu0 0.0
    %103 = vmatpush1.xpose.msra.mxu0 %v85
    %104 = vmatprep.subr.mxu0 0.0
    %105 = vmatpush1.xpose.msra.mxu0 %v82
    %106 = vmatprep.subr.mxu0 0.0
    %107 = vmatpush1.xpose.msra.mxu0 %v79
    %108 = vmatprep.subr.mxu0 0.0
    %109 = vmatpush1.xpose.msra.mxu0 %v76
    %110 = vmatprep.subr.mxu0 0.0
    %111 = vmatpush1.xpose.msra.mxu0 %v73
    %112 = vmatprep.subr.mxu0 0.0
    %113 = vmatpush1.xpose.msra.mxu0 %v70
    %114 = vmatprep.subr.mxu0 0.0
    %115 = vmatpush1.xpose.msra.mxu0 %v67
    %116 = vmatprep.subr.mxu0 0.0
    %117 = vmatpush1.xpose.msra.mxu0 %v64
    %118 = vmatprep.subr.mxu0 0.0
    %119 = vmatpush1.xpose.msra.mxu0 %v61
    %120 = vmatprep.subr.mxu0 0.0
    %121 = vmatpush1.xpose.msra.mxu0 %v58
    %122 = vmatprep.subr.mxu0 0.0
    %123 = vmatpush1.xpose.msra.mxu0 %v55
    %124 = vmatprep.subr.mxu0 0.0
    %125 = vmatpush1.xpose.msra.mxu0 %v52
    %126 = vmatprep.subr.mxu0 0.0
    %127 = vmatpush1.xpose.msra.mxu0 %v49
    %128 = vmatprep.subr.mxu0 0.0
    %129 = vmatpush2.xpose.msra.mxu0 0.0
    %130 = vmatprep.subr.mxu0 0.0
    %131 = vmatpush2.xpose.msra.mxu0 0.0
    %132 = vmatprep.subr.mxu0 0.0
    %133 = vmatpush2.xpose.msra.mxu0 0.0
    %134 = vmatprep.subr.mxu0 0.0
    %135 = vmatpush2.xpose.msra.mxu0 0.0
    %136 = vmatprep.subr.mxu0 0.0
    %137 = vmatpush2.xpose.msra.mxu0 0.0
    %138 = vmatprep.subr.mxu0 0.0
    %139 = vmatpush2.xpose.msra.mxu0 0.0
    %140 = vmatprep.subr.mxu0 0.0
    %141 = vmatpush2.xpose.msra.mxu0 0.0
    %142 = vmatprep.subr.mxu0 0.0
    %143 = vmatpush2.xpose.msra.mxu0 0.0
    %144 = vmatprep.subr.mxu0 0.0
    %145 = vmatpush2.xpose.msra.mxu0 0.0
    %146 = vmatprep.subr.mxu0 0.0
    %147 = vmatpush2.xpose.msra.mxu0 0.0
    %148 = vmatprep.subr.mxu0 0.0
    %149 = vmatpush2.xpose.msra.mxu0 0.0
    %150 = vmatprep.subr.mxu0 0.0
    %151 = vmatpush2.xpose.msra.mxu0 0.0
    %152 = vmatprep.subr.mxu0 0.0
    %153 = vmatpush2.xpose.msra.mxu0 0.0
    %154 = vmatprep.subr.mxu0 0.0
    %155 = vmatpush2.xpose.msra.mxu0 0.0
    %156 = vmatprep.subr.mxu0 0.0
    %157 = vmatpush2.xpose.msra.mxu0 0.0
    %158 = vmatprep.subr.mxu0 0.0
    %159 = vmatpush2.xpose.msra.mxu0 0.0
    %160 = vmatprep.mubr.f32.mxu0 0.0
    %161 = vmatmul.mubr.f32.gmra.mxu0 %v44
    %v162 = vpop.f32.mrf.mxu0
    %v163 = vadd.f32 %v36, %v162
    %v164 = vpop.f32.mrf.mxu0
    %165 = vmatprep.mubr.f32.mxu0 0.0
    %166 = vmatmul.mubr.f32.gmra.mxu0 %v46
    %v167 = vpop.f32.mrf.mxu0
    %v168 = vadd.f32 %v41, %v167
    %v169 = vpop.f32.mrf.mxu0
    %170 = vdwg.mxu0
    %v171 = vmax.f32 %v163, 0.0
    %v172 = vmax.f32 %v168, 0.0
    %174 = vset.pattern.permute.xlu0 64
    %175 = vperm.xlu0 %174, %v14
    %v176 = vpop.permute.xlu0 %175
    %vm178 = vcmask 97280
    %v179 = vsel %vm178, %v14, 0
    %vm181 = vcmask 1043456
    %v183 = vsel %vm181, %v172, 0
    %185 = vmatprep.subr.mxu0 0.0
    %186 = vmatpush1.msra.mxu0 0.0
    %187 = vmatprep.subr.mxu0 0.0
    %188 = vmatpush1.msra.mxu0 0.0
    %189 = vmatprep.subr.mxu0 0.0
    %190 = vmatpush1.msra.mxu0 0.0
    %191 = vmatprep.subr.mxu0 0.0
    %192 = vmatpush1.msra.mxu0 0.0
    %193 = vmatprep.subr.mxu0 0.0
    %194 = vmatpush1.msra.mxu0 0.0
    %195 = vmatprep.subr.mxu0 0.0
    %196 = vmatpush1.msra.mxu0 0.0
    %197 = vmatprep.subr.mxu0 0.0
    %198 = vmatpush1.msra.mxu0 0.0
    %199 = vmatprep.subr.mxu0 0.0
    %200 = vmatpush1.msra.mxu0 0.0
    %201 = vmatprep.subr.mxu0 0.0
    %202 = vmatpush1.msra.mxu0 0.0
    %203 = vmatprep.subr.mxu0 0.0
    %204 = vmatpush1.msra.mxu0 0.0
    %205 = vmatprep.subr.mxu0 0.0
    %206 = vmatpush1.msra.mxu0 0.0
    %207 = vmatprep.subr.mxu0 0.0
    %208 = vmatpush1.msra.mxu0 0.0
    %209 = vmatprep.subr.mxu0 0.0
    %210 = vmatpush1.msra.mxu0 0.0
    %211 = vmatprep.subr.mxu0 0.0
    %212 = vmatpush1.msra.mxu0 0.0
    %213 = vmatprep.subr.mxu0 0.0
    %214 = vmatpush1.msra.mxu0 %v183
    %215 = vmatprep.subr.mxu0 0.0
    %216 = vmatpush1.msra.mxu0 %v171
    %217 = vmatprep.subr.mxu0 0.0
    %218 = vmatpush2.msra.mxu0 0.0
    %219 = vmatprep.subr.mxu0 0.0
    %220 = vmatpush2.msra.mxu0 0.0
    %221 = vmatprep.subr.mxu0 0.0
    %222 = vmatpush2.msra.mxu0 0.0
    %223 = vmatprep.subr.mxu0 0.0
    %224 = vmatpush2.msra.mxu0 0.0
    %225 = vmatprep.subr.mxu0 0.0
    %226 = vmatpush2.msra.mxu0 0.0
    %227 = vmatprep.subr.mxu0 0.0
    %228 = vmatpush2.msra.mxu0 0.0
    %229 = vmatprep.subr.mxu0 0.0
    %230 = vmatpush2.msra.mxu0 0.0
    %231 = vmatprep.subr.mxu0 0.0
    %232 = vmatpush2.msra.mxu0 0.0
    %233 = vmatprep.subr.mxu0 0.0
    %234 = vmatpush2.msra.mxu0 0.0
    %235 = vmatprep.subr.mxu0 0.0
    %236 = vmatpush2.msra.mxu0 0.0
    %237 = vmatprep.subr.mxu0 0.0
    %238 = vmatpush2.msra.mxu0 0.0
    %239 = vmatprep.subr.mxu0 0.0
    %240 = vmatpush2.msra.mxu0 0.0
    %241 = vmatprep.subr.mxu0 0.0
    %242 = vmatpush2.msra.mxu0 0.0
    %243 = vmatprep.subr.mxu0 0.0
    %244 = vmatpush2.msra.mxu0 0.0
    %245 = vmatprep.subr.mxu0 0.0
    %246 = vmatpush2.msra.mxu0 0.0
    %247 = vmatprep.subr.mxu0 0.0
    %248 = vmatpush2.msra.mxu0 0.0
    %249 = vmatprep.mubr.f32.mxu0 0.0
    %250 = vmatmul.mubr.f32.gmra.mxu0 %v179
    %v251 = vpop.f32.mrf.mxu0
    %v252 = vadd.f32 %v176, %v251
    %v253 = vpop.f32.mrf.mxu0
    %254 = vdwg.mxu0
    %v255 = vmax.f32 %v252, 0.0
    %257 = vset.pattern.permute.xlu0 0
    %258 = vperm.xlu0 %257, %v15
    %v259 = vpop.permute.xlu0 %258
    %v261 = vmul.f32 %v255, %v259
    %v262 = vsel %vm181, %v261, 0.0
    %v263 = vrot.slane %v262, 4
    %v264 = vadd.f32 %v262, %v263
    %v265 = vrot.slane %v264, 2
    %v266 = vadd.f32 %v264, %v265
    %v267 = vrot.slane %v266, 1
    %v268 = vadd.f32 %v266, %v267
    %270 = vset.pattern.permute.xlu0 0
    %271 = vperm.xlu0 %270, %v16
    %v272 = vpop.permute.xlu0 %271
    %v274 = vadd.f32 %v268, %v272
    %v275 = vsub.f32 %v274, %v274
    %v276 = vmul.f32 %v275, 1.442695
    %v277 = vpow.pop %v276
    %278 = vst [vmem:[#allocation2] sm:$0x1] %v277
    // Predicated region
    $region10: #{tpu_custom_call.1} parent=1 // pred_check
      _
    $region11: #{tpu_custom_call.1} parent=1 // pred_check_branch
      %280 = sbr.rel (0) target = $region13
    $region12: #{tpu_custom_call.1} parent=1 // pred_region
      %s282 = ssub.s32 16, 16
      %283 = vsyncadd [#allocation3], %s282
      %s285 = sshll.u32 [#allocation2], 4
      %s286 = int_to_ptr.vmem [resolvable:$true] %s285
      %288 = dma.vmem_to_hbm [thread:$0]  %s286, 16, %s2, [#allocation3]
    $region13: #{tpu_custom_call.1} parent=1 // pred_fallthru
      _
    // Predicated region
    $region14: #{tpu_custom_call.1} parent=1 // pred_check
      _
    $region15: #{tpu_custom_call.1} parent=1 // pred_check_branch
      %290 = sbr.rel (0) target = $region17
    $region16: #{tpu_custom_call.1} parent=1 // pred_region
      %291 = dma.done [#allocation3], 16
    $region17: #{tpu_custom_call.1} parent=1 // pred_fallthru
      _
    %292 = vsyncpa [#allocation3], 1

</llo_original>
